<compile_context>
chip_gen: v7x
topology: tpu7x:2x2x1
jax: 0.10.0
libtpu: 0.0.40
codegen_flags: <defaults>
</compile_context>

<pallas_src>
import functools
import math

import jax
import jax.numpy as jnp
from jax.experimental import pallas as pl
from jax.experimental.pallas import tpu as pltpu


# ----------------------------------------------------------------------------
# Hardware-aware sizing helpers
# ----------------------------------------------------------------------------
def _vmem_capacity_bytes():
    try:
        return int(pltpu.get_tpu_info().vmem_capacity_bytes)
    except Exception:
        # Conservative fallback: v7x has 64 MiB of VMEM per TensorCore.
        return 64 * 1024 * 1024


def _vmem_limit_bytes():
    # Scoped default is only 16/32 MiB; raise it, leaving headroom below the
    # physical capacity (128 MiB on v5e/v6e, 64 MiB on v7x).
    return min(int(_vmem_capacity_bytes() * 0.75), 100 * 1024 * 1024)


def _round_up(v, m):
    return -(-v // m) * m


def _choose_pack(hidden, rows, max_lanes=512):
    """Rows folded into one lane vector so the lane width is a multiple of 128."""
    if hidden % 128 == 0:
        return 1
    base = math.lcm(hidden, 128) // hidden
    if base * hidden > max_lanes:
        return 1                       # packing would need an oversized lane vector
    if rows % base != 0:
        return 1                       # a free contiguous reshape needs rows % pack == 0
    return base


def _choose_tile_rows(n_super, lanes, dtype_bytes, use_blkdiag):
    """Packed rows per block, sized by bytes (not rows) and VMEM budget."""
    vmem_limit = _vmem_limit_bytes()
    sublane = max(8, 32 // dtype_bytes)            # f32: 8, bf16: 16, int8/fp8: 32

    # Target ~4 MiB input blocks: amortizes the ~0.35us per-grid-step overhead
    # even at v7x's 3.2 TB/s HBM, same block *bytes* for every dtype.
    target_block_bytes = 4 * 1024 * 1024
    tile = max(sublane, target_block_bytes // (lanes * dtype_bytes))

    # VMEM budget: double-buffered input + output blocks plus ~6 full-block f32
    # temporaries and the resident block-diagonal matrix; keep <=50% of the
    # scoped limit so the halved v7x VMEM (64 MiB) never OOMs or spills.
    fixed = (2 * lanes * lanes * 4) if use_blkdiag else 0
    per_row = 4 * lanes * dtype_bytes + 6 * lanes * 4
    budget = max(int(vmem_limit * 0.5) - fixed, per_row * sublane)
    tile = min(tile, budget // per_row)

    # Guarantee enough grid steps for v7x's 2 TensorCores once there is enough
    # work for the extra per-step overhead to be negligible.
    total_bytes = n_super * lanes * dtype_bytes
    if total_bytes >= 32 * 1024 * 1024:
        min_steps = 8
    elif total_bytes >= 2 * 1024 * 1024:
        min_steps = 2
    else:
        min_steps = 1
    tile = min(tile, _round_up(pl.cdiv(n_super, min_steps), sublane))

    tile = max(sublane, (tile // sublane) * sublane)
    if tile >= n_super:
        # Single full-extent block: always legal (block dim == array dim) and
        # avoids any edge clipping for small inputs.
        return n_super
    return tile


# ----------------------------------------------------------------------------
# Kernel
# ----------------------------------------------------------------------------
def _make_kernel(mode, hidden, pack, eps, adanorm_scale, use_affine):
    """Pallas kernel specialized (statically) for one mode.

    Block layout is (tile, pack*hidden): `pack` independent rows are packed
    along the lane axis; per-row statistics are per hidden-wide lane segment.
    """
    inv_h = 1.0 / hidden
    # torch.std is unbiased (divide by N-1).  hidden == 1 is undefined in
    # PyTorch (NaN); we only guard the divide-by-zero here.
    inv_hm1 = 1.0 / (hidden - 1) if hidden > 1 else 0.0
    needs_std = mode in ('adanorm', 'nowb', 'gradnorm', 'std')

    def kernel(*refs):
        refs = list(refs)
        x_ref = refs.pop(0)
        blk_ref = refs.pop(0) if pack > 1 else None
        if use_affine:
            w_ref = refs.pop(0)
            b_ref = refs.pop(0)
        o_ref = refs.pop(0)

        x = x_ref[...].astype(jnp.float32)            # (tile, pack*hidden)

        if pack > 1:
            blk = blk_ref[...]                        # (lanes, lanes) block-diag ones

            def seg_sum(v):
                # One MXU matmul: per-segment sum, already broadcast across
                # each hidden-wide lane segment.  Segments never mix across
                # rows, so garbage rows of a clipped edge block stay confined
                # to rows whose writeback is dropped anyway.
                return jnp.dot(v, blk, preferred_element_type=jnp.float32)
        else:
            def seg_sum(v):
                return jnp.sum(v, axis=-1, keepdims=True)   # broadcasts

        mean = seg_sum(x) * inv_h
        xc = x - mean

        if needs_std:
            var = seg_sum(xc * xc) * inv_hm1
            inv = pl.reciprocal(jnp.sqrt(var) + eps)   # one exact reciprocal

        if mode == 'adanorm':
            # PyTorch: graNorm = 0.1*(xc - mean(xc))/(std+eps); mean(xc) is
            # analytically zero and dropped (float-rounding-level change).
            g = 0.1 * xc * inv
            y = xc * (1.0 - g) * inv * adanorm_scale
        elif mode == 'nowb':
            y = xc * inv
        elif mode == 'gradnorm':
            y = x + xc * inv                           # forward of detach() + norm
        elif mode == 'mean':
            y = xc
            if use_affine:
                y = w_ref[...].astype(jnp.float32) * y + b_ref[...].astype(jnp.float32)
        elif mode == 'std':
            y = x * inv                                # 'std' does not center
            if use_affine:
                y = w_ref[...].astype(jnp.float32) * y + b_ref[...].astype(jnp.float32)
        else:
            raise NotImplementedError(mode)

        o_ref[...] = y.astype(o_ref.dtype)

    return kernel


# ----------------------------------------------------------------------------
# Wrapper
# ----------------------------------------------------------------------------
@functools.partial(
    jax.jit,
    static_argnames=('mode', 'eps', 'adanorm_scale', 'elementwise_affine'),
)
def layer_norm_impl(x, weight, bias, *, mode='adanorm', eps=1e-5,
                    adanorm_scale=1.0, elementwise_affine=True):
    """Pallas implementation of LayerNormImpl.forward for the given mode."""
    if mode == 'no_norm':
        # Module constructor forces elementwise_affine=False for no_norm.
        return x
    if mode == 'topk':
        # TODO(synk): 'topk' needs a global top-k + scatter over the flattened
        # (T*B, H) tensor before layer_norm; not implemented as a Pallas kernel.
        raise NotImplementedError("topk mode is not implemented")

    orig_shape = x.shape
    orig_dtype = x.dtype
    hidden = orig_shape[-1]
    rows = x.size // hidden
    if rows == 0:
        return x

    pack = _choose_pack(hidden, rows)
    lanes = pack * hidden
    n_super = rows // pack                       # exact by construction
    dtype_bytes = jnp.dtype(orig_dtype).itemsize

    use_blkdiag = pack > 1
    use_affine = bool(elementwise_affine) and mode in ('mean', 'std')
    tile = _choose_tile_rows(n_super, lanes, dtype_bytes, use_blkdiag)

    x2 = x.reshape(n_super, lanes)               # free, contiguous reshape
    grid = (pl.cdiv(n_super, tile),)             # ragged tail: edge block clipped

    args = [x2]
    in_specs = [pl.BlockSpec((tile, lanes), lambda i: (i, 0))]
    if use_blkdiag:
        seg = jnp.arange(lanes, dtype=jnp.int32) // hidden
        blkdiag = (seg[:, None] == seg[None, :]).astype(jnp.float32)
        args.append(blkdiag)
        in_specs.append(pl.BlockSpec((lanes, lanes), lambda i: (0, 0)))  # resident
    if use_affine:
        w_l = jnp.tile(weight.reshape(1, hidden), (1, pack))
        b_l = jnp.tile(bias.reshape(1, hidden), (1, pack))
        args += [w_l, b_l]
        in_specs += [pl.BlockSpec((1, lanes), lambda i: (0, 0)),
                     pl.BlockSpec((1, lanes), lambda i: (0, 0))]

    out = pl.pallas_call(
        _make_kernel(mode, hidden, pack, eps, adanorm_scale, use_affine),
        out_shape=jax.ShapeDtypeStruct((n_super, lanes), orig_dtype),
        grid_spec=pltpu.PrefetchScalarGridSpec(
            num_scalar_prefetch=0,
            grid=grid,
            in_specs=in_specs,
            out_specs=pl.BlockSpec((tile, lanes), lambda i: (i, 0)),
        ),
        compiler_params=pltpu.CompilerParams(
            dimension_semantics=("parallel",),
            vmem_limit_bytes=_vmem_limit_bytes(),
        ),
    )(*args)

    return out.reshape(orig_shape)


# ----------------------------------------------------------------------------
# Pure-JAX reference mirroring the PyTorch forward (for verification)
# ----------------------------------------------------------------------------
def _reference(x, weight, bias, mode, eps=1e-5, adanorm_scale=1.0):
    x = x.astype(jnp.float32)
    h = x.shape[-1]
    mean = jnp.mean(x, axis=-1, keepdims=True)
    std = jnp.sqrt(jnp.sum((x - mean) ** 2, axis=-1, keepdims=True) / (h - 1))
    if mode == 'adanorm':
        xc = x - mean
        m2 = jnp.mean(xc, axis=-1, keepdims=True)
        g = 0.1 * (xc - m2) / (std + eps)
        return (xc - xc * g) / (std + eps) * adanorm_scale
    if mode == 'nowb':
        return (x - mean) / (std + eps)
    if mode == 'gradnorm':
        return x + (x - mean) / (std + eps)
    if mode == 'mean':
        return weight * (x - mean) + bias
    if mode == 'std':
        return weight * (x / (std + eps)) + bias
    if mode == 'no_norm':
        return x
    raise NotImplementedError(mode)


def _check(name, out, ref, atol=2e-5, rtol=2e-5):
    assert out.shape == ref.shape, f"{name}: shape mismatch {out.shape} vs {ref.shape}"
    assert jnp.allclose(out.astype(jnp.float32), ref, atol=atol, rtol=rtol), f"{name} mismatch"


if __name__ == "__main__":
    key = jax.random.PRNGKey(0)
    k_x, k_w, k_b, k_y, k_z = jax.random.split(key, 5)

    # Small (T, B, hidden) case, hidden=32 -> lane packing (pack=4) + MXU seg-sum.
    T, B, HIDDEN = 8, 4, 32
    x = jax.random.normal(k_x, (T, B, HIDDEN), dtype=jnp.float32)
    weight = 1.0 + 0.1 * jax.random.normal(k_w, (HIDDEN,), dtype=jnp.float32)
    bias = 0.1 * jax.random.normal(k_b, (HIDDEN,), dtype=jnp.float32)

    out = jax.block_until_ready(layer_norm_impl(x, weight, bias, mode='adanorm'))
    _check('adanorm', out, _reference(x, weight, bias, 'adanorm'))
    for m in ('nowb', 'gradnorm', 'mean', 'std', 'no_norm'):
        o = jax.block_until_ready(layer_norm_impl(x, weight, bias, mode=m))
        _check(m, o, _reference(x, weight, bias, m))

    # Non-power-of-two hidden (96 -> pack=4 -> 384 lanes) with affine.
    H2 = 96
    x2 = jax.random.normal(k_y, (8, 6, H2), dtype=jnp.float32)
    w2 = 1.0 + 0.1 * jax.random.normal(k_w, (H2,), dtype=jnp.float32)
    b2 = 0.1 * jax.random.normal(k_b, (H2,), dtype=jnp.float32)
    o2 = jax.block_until_ready(layer_norm_impl(x2, w2, b2, mode='std'))
    _check('std_h96', o2, _reference(x2, w2, b2, 'std'))

    # Medium ragged case: multi-step grid whose last block is clipped (no pad).
    x3 = jax.random.normal(k_z, (2500, 8, HIDDEN), dtype=jnp.float32)
    o3 = jax.block_until_ready(layer_norm_impl(x3, weight, bias, mode='adanorm'))
    _check('adanorm_ragged', o3, _reference(x3, weight, bias, 'adanorm'))

    print("KERNEL_OK")
</pallas_src>

<mosaic_0001>
module attributes {stable_mosaic.version = 11 : i64} {
  func.func @kernel(%arg0: i32, %arg1: memref<8x128xf32, #tpu.memory_space<vmem>>, %arg2: memref<128x128xf32, #tpu.memory_space<vmem>>, %arg3: memref<8x128xf32, #tpu.memory_space<vmem>>) attributes {dimension_semantics = [#tpu.dimension_semantics<parallel>], iteration_bounds = array<i64: 1>, scalar_prefetch = 0 : i64, scratch_operands = 0 : i64, tpu.core_type = #tpu.core_type<tc>, window_params = [{transform_indices = @transform_0, window_bounds = array<i64: 8, 128>}, {pipeline_mode = #tpu.pipeline_mode<synchronous>, transform_indices = @transform_1, window_bounds = array<i64: 128, 128>}, {transform_indices = @transform_2, window_bounds = array<i64: 8, 128>}]} {
    %c0 = arith.constant 0 : index
    %c0_0 = arith.constant 0 : index
    %0 = vector.load %arg1[%c0, %c0_0] : memref<8x128xf32, #tpu.memory_space<vmem>>, vector<8x128xf32>
    %c0_1 = arith.constant 0 : index
    %c0_2 = arith.constant 0 : index
    %1 = vector.load %arg2[%c0_1, %c0_2] : memref<128x128xf32, #tpu.memory_space<vmem>>, vector<128x128xf32>
    %cst = arith.constant dense<0.000000e+00> : vector<8x128xf32>
    %2 = tpu.matmul %0, %1, %cst {dimension_numbers = #tpu.dot_dimension_numbers<[1], [0], [0], [1], [0, 0, 1, 1], [], []>} : vector<8x128xf32>, vector<128x128xf32>, vector<8x128xf32> -> vector<8x128xf32>
    %cst_3 = arith.constant 3.125000e-02 : f32
    %3 = vector.broadcast %cst_3 : f32 to vector<8x128xf32>
    %4 = arith.mulf %2, %3 : vector<8x128xf32>
    %5 = arith.subf %0, %4 : vector<8x128xf32>
    %6 = arith.mulf %5, %5 : vector<8x128xf32>
    %cst_4 = arith.constant dense<0.000000e+00> : vector<8x128xf32>
    %7 = tpu.matmul %6, %1, %cst_4 {dimension_numbers = #tpu.dot_dimension_numbers<[1], [0], [0], [1], [0, 0, 1, 1], [], []>} : vector<8x128xf32>, vector<128x128xf32>, vector<8x128xf32> -> vector<8x128xf32>
    %cst_5 = arith.constant 0.0322580636 : f32
    %8 = vector.broadcast %cst_5 : f32 to vector<8x128xf32>
    %9 = arith.mulf %7, %8 : vector<8x128xf32>
    %10 = math.sqrt %9 : vector<8x128xf32>
    %cst_6 = arith.constant 9.99999974E-6 : f32
    %11 = vector.broadcast %cst_6 : f32 to vector<8x128xf32>
    %12 = arith.addf %10, %11 : vector<8x128xf32>
    %13 = tpu.reciprocal %12 : vector<8x128xf32> -> vector<8x128xf32>
    %cst_7 = arith.constant 1.000000e-01 : f32
    %14 = vector.broadcast %cst_7 : f32 to vector<8x128xf32>
    %15 = arith.mulf %14, %5 : vector<8x128xf32>
    %16 = arith.mulf %15, %13 : vector<8x128xf32>
    %cst_8 = arith.constant 1.000000e+00 : f32
    %17 = vector.broadcast %cst_8 : f32 to vector<8x128xf32>
    %18 = arith.subf %17, %16 : vector<8x128xf32>
    %19 = arith.mulf %5, %18 : vector<8x128xf32>
    %20 = arith.mulf %19, %13 : vector<8x128xf32>
    %cst_9 = arith.constant 1.000000e+00 : f32
    %21 = vector.broadcast %cst_9 : f32 to vector<8x128xf32>
    %22 = arith.mulf %20, %21 : vector<8x128xf32>
    %c0_10 = arith.constant 0 : index
    %c0_11 = arith.constant 0 : index
    %23 = vector.load %arg3[%c0_10, %c0_11] : memref<8x128xf32, #tpu.memory_space<vmem>>, vector<8x128xf32>
    tpu.vector_store %arg3[%c0_10, %c0_11], %22 {strides = array<i32>} : memref<8x128xf32, #tpu.memory_space<vmem>>, vector<8x128xf32>,
    return
  }
  func.func @transform_0(%arg0: i32) -> (i32, i32) {
    %c0_i32 = arith.constant 0 : i32
    %c0_i32_0 = arith.constant 0 : i32
    return %arg0, %c0_i32 : i32, i32
  }
  func.func @transform_1(%arg0: i32) -> (i32, i32) {
    %c0_i32 = arith.constant 0 : i32
    %c0_i32_0 = arith.constant 0 : i32
    %c0_i32_1 = arith.constant 0 : i32
    return %c0_i32, %c0_i32_0 : i32, i32
  }
  func.func @transform_2(%arg0: i32) -> (i32, i32) {
    %c0_i32 = arith.constant 0 : i32
    %c0_i32_0 = arith.constant 0 : i32
    return %arg0, %c0_i32 : i32, i32
  }
}

</mosaic_0001>

<llo_original>
// kernel: layer_norm_impl.1
$region0: #{layer_norm_impl.1}
  #allocation0 [shape = 'u32[]', space=smem, size = 0x4, offset = 0x4, fixed_abs, tag = 'smem constant byte address 0x4 - core index']
  #allocation1 [shape = 'u32[144,128]{1,0:T(1,128)}', space=vmem, size = 0x12000, scoped, tag = 'internal scratch']
  %s0 = inlined_call_operand.vmem [shape: f32[8,128], index: 0, kind: input, shape index: {}]
  %s1 = inlined_call_operand.vmem [shape: f32[128,128], index: 1, kind: input, shape index: {}]
  %s2 = inlined_call_operand.vmem [shape: f32[8,128], index: 2, kind: output, shape index: {}]
  %s3 = sld [smem:[#allocation0]]
  $region18: #{layer_norm_impl.1} parent=0
    _
  %s5 = ssub.s32 1, %s3
  %s6 = scalar_select 0, %s5, %s3
  // Predicated region
  $region2: #{layer_norm_impl.1} parent=0 // pred_check
    _
  $region3: #{layer_norm_impl.1} parent=0 // pred_check_branch
    %8 = sbr.rel (0) target = $region5
  $region4: #{layer_norm_impl.1} parent=0 // pred_region
    _
  $region5: #{layer_norm_impl.1} parent=0 // pred_fallthru
    _
  // Predicated region
  $region6: #{layer_norm_impl.1} parent=0 // pred_check
    _
  $region7: #{layer_norm_impl.1} parent=0 // pred_check_branch
    %10 = sbr.rel (0) target = $region9
  $region8: #{layer_norm_impl.1} parent=0 // pred_region
    _
  $region9: #{layer_norm_impl.1} parent=0 // pred_fallthru
    _
  %v11 = vld [vmem:[%s0] sm:$0xff]
  %v12 = vld [vmem:[%s1] sm:$0xff]
  %v13 = vld [vmem:[%s1 + $0x8] sm:$0xff]
  %v14 = vld [vmem:[%s1 + $0x10] sm:$0xff]
  %v15 = vld [vmem:[%s1 + $0x18] sm:$0xff]
  %v16 = vld [vmem:[%s1 + $0x20] sm:$0xff]
  %v17 = vld [vmem:[%s1 + $0x28] sm:$0xff]
  %v18 = vld [vmem:[%s1 + $0x30] sm:$0xff]
  %v19 = vld [vmem:[%s1 + $0x38] sm:$0xff]
  %v20 = vld [vmem:[%s1 + $0x40] sm:$0xff]
  %v21 = vld [vmem:[%s1 + $0x48] sm:$0xff]
  %v22 = vld [vmem:[%s1 + $0x50] sm:$0xff]
  %v23 = vld [vmem:[%s1 + $0x58] sm:$0xff]
  %v24 = vld [vmem:[%s1 + $0x60] sm:$0xff]
  %v25 = vld [vmem:[%s1 + $0x68] sm:$0xff]
  %v26 = vld [vmem:[%s1 + $0x70] sm:$0xff]
  %v27 = vld [vmem:[%s1 + $0x78] sm:$0xff]
  %28 = vmatprep.subr.mxu0 0.0
  %29 = vmatpush1.msra.mxu0 %v12
  %30 = vmatprep.subr.mxu0 0.0
  %31 = vmatpush1.msra.mxu0 %v13
  %32 = vmatprep.subr.mxu0 0.0
  %33 = vmatpush1.msra.mxu0 %v14
  %34 = vmatprep.subr.mxu0 0.0
  %35 = vmatpush1.msra.mxu0 %v15
  %36 = vmatprep.subr.mxu0 0.0
  %37 = vmatpush1.msra.mxu0 %v16
  %38 = vmatprep.subr.mxu0 0.0
  %39 = vmatpush1.msra.mxu0 %v17
  %40 = vmatprep.subr.mxu0 0.0
  %41 = vmatpush1.msra.mxu0 %v18
  %42 = vmatprep.subr.mxu0 0.0
  %43 = vmatpush1.msra.mxu0 %v19
  %44 = vmatprep.subr.mxu0 0.0
  %45 = vmatpush1.msra.mxu0 %v20
  %46 = vmatprep.subr.mxu0 0.0
  %47 = vmatpush1.msra.mxu0 %v21
  %48 = vmatprep.subr.mxu0 0.0
  %49 = vmatpush1.msra.mxu0 %v22
  %50 = vmatprep.subr.mxu0 0.0
  %51 = vmatpush1.msra.mxu0 %v23
  %52 = vmatprep.subr.mxu0 0.0
  %53 = vmatpush1.msra.mxu0 %v24
  %54 = vmatprep.subr.mxu0 0.0
  %55 = vmatpush1.msra.mxu0 %v25
  %56 = vmatprep.subr.mxu0 0.0
  %57 = vmatpush1.msra.mxu0 %v26
  %58 = vmatprep.subr.mxu0 0.0
  %59 = vmatpush1.msra.mxu0 %v27
  %60 = vmatprep.subr.mxu0 0.0
  %61 = vmatpush1.msra.mxu0 0.0
  %62 = vmatprep.subr.mxu0 0.0
  %63 = vmatpush1.msra.mxu0 0.0
  %64 = vmatprep.subr.mxu0 0.0
  %65 = vmatpush1.msra.mxu0 0.0
  %66 = vmatprep.subr.mxu0 0.0
  %67 = vmatpush1.msra.mxu0 0.0
  %68 = vmatprep.subr.mxu0 0.0
  %69 = vmatpush1.msra.mxu0 0.0
  %70 = vmatprep.subr.mxu0 0.0
  %71 = vmatpush1.msra.mxu0 0.0
  %72 = vmatprep.subr.mxu0 0.0
  %73 = vmatpush1.msra.mxu0 0.0
  %74 = vmatprep.subr.mxu0 0.0
  %75 = vmatpush1.msra.mxu0 0.0
  %76 = vmatprep.subr.mxu0 0.0
  %77 = vmatpush1.msra.mxu0 0.0
  %78 = vmatprep.subr.mxu0 0.0
  %79 = vmatpush1.msra.mxu0 0.0
  %80 = vmatprep.subr.mxu0 0.0
  %81 = vmatpush1.msra.mxu0 0.0
  %82 = vmatprep.subr.mxu0 0.0
  %83 = vmatpush1.msra.mxu0 0.0
  %84 = vmatprep.subr.mxu0 0.0
  %85 = vmatpush1.msra.mxu0 0.0
  %86 = vmatprep.subr.mxu0 0.0
  %87 = vmatpush1.msra.mxu0 0.0
  %88 = vmatprep.subr.mxu0 0.0
  %89 = vmatpush1.msra.mxu0 0.0
  %90 = vmatprep.subr.mxu0 0.0
  %91 = vmatpush1.msra.mxu0 0.0
  %92 = vmatprep.mubr.f32.mxu0 0.0
  %93 = vmatmul.mubr.f32.gmra.mrb[0].mxu0 %v11
  %v94 = vpop.f32.mrb[0].mxu0
  %v95 = vadd.f32 0.0, %v94
  %v96 = vpop.f32.mrb[0].mxu0
  %97 = vdwg.mxu0
  %v98 = vmul.f32 %v95, 0.03125
  %v99 = vsub.f32 %v11, %v98
  %v100 = vmul.f32 %v99, %v99
  %101 = vmatprep.subr.mxu0 0.0
  %102 = vmatpush1.msra.mxu0 %v12
  %103 = vmatprep.subr.mxu0 0.0
  %104 = vmatpush1.msra.mxu0 %v13
  %105 = vmatprep.subr.mxu0 0.0
  %106 = vmatpush1.msra.mxu0 %v14
  %107 = vmatprep.subr.mxu0 0.0
  %108 = vmatpush1.msra.mxu0 %v15
  %109 = vmatprep.subr.mxu0 0.0
  %110 = vmatpush1.msra.mxu0 %v16
  %111 = vmatprep.subr.mxu0 0.0
  %112 = vmatpush1.msra.mxu0 %v17
  %113 = vmatprep.subr.mxu0 0.0
  %114 = vmatpush1.msra.mxu0 %v18
  %115 = vmatprep.subr.mxu0 0.0
  %116 = vmatpush1.msra.mxu0 %v19
  %117 = vmatprep.subr.mxu0 0.0
  %118 = vmatpush1.msra.mxu0 %v20
  %119 = vmatprep.subr.mxu0 0.0
  %120 = vmatpush1.msra.mxu0 %v21
  %121 = vmatprep.subr.mxu0 0.0
  %122 = vmatpush1.msra.mxu0 %v22
  %123 = vmatprep.subr.mxu0 0.0
  %124 = vmatpush1.msra.mxu0 %v23
  %125 = vmatprep.subr.mxu0 0.0
  %126 = vmatpush1.msra.mxu0 %v24
  %127 = vmatprep.subr.mxu0 0.0
  %128 = vmatpush1.msra.mxu0 %v25
  %129 = vmatprep.subr.mxu0 0.0
  %130 = vmatpush1.msra.mxu0 %v26
  %131 = vmatprep.subr.mxu0 0.0
  %132 = vmatpush1.msra.mxu0 %v27
  %133 = vmatprep.subr.mxu0 0.0
  %134 = vmatpush1.msra.mxu0 0.0
  %135 = vmatprep.subr.mxu0 0.0
  %136 = vmatpush1.msra.mxu0 0.0
  %137 = vmatprep.subr.mxu0 0.0
  %138 = vmatpush1.msra.mxu0 0.0
  %139 = vmatprep.subr.mxu0 0.0
  %140 = vmatpush1.msra.mxu0 0.0
  %141 = vmatprep.subr.mxu0 0.0
  %142 = vmatpush1.msra.mxu0 0.0
  %143 = vmatprep.subr.mxu0 0.0
  %144 = vmatpush1.msra.mxu0 0.0
  %145 = vmatprep.subr.mxu0 0.0
  %146 = vmatpush1.msra.mxu0 0.0
  %147 = vmatprep.subr.mxu0 0.0
  %148 = vmatpush1.msra.mxu0 0.0
  %149 = vmatprep.subr.mxu0 0.0
  %150 = vmatpush1.msra.mxu0 0.0
  %151 = vmatprep.subr.mxu0 0.0
  %152 = vmatpush1.msra.mxu0 0.0
  %153 = vmatprep.subr.mxu0 0.0
  %154 = vmatpush1.msra.mxu0 0.0
  %155 = vmatprep.subr.mxu0 0.0
  %156 = vmatpush1.msra.mxu0 0.0
  %157 = vmatprep.subr.mxu0 0.0
  %158 = vmatpush1.msra.mxu0 0.0
  %159 = vmatprep.subr.mxu0 0.0
  %160 = vmatpush1.msra.mxu0 0.0
  %161 = vmatprep.subr.mxu0 0.0
  %162 = vmatpush1.msra.mxu0 0.0
  %163 = vmatprep.subr.mxu0 0.0
  %164 = vmatpush1.msra.mxu0 0.0
  %165 = vmatprep.mubr.f32.mxu0 0.0
  %166 = vmatmul.mubr.f32.gmra.mrb[0].mxu0 %v100
  %v167 = vpop.f32.mrb[0].mxu0
  %v168 = vadd.f32 0.0, %v167
  %v169 = vpop.f32.mrb[0].mxu0
  %170 = vdwg.mxu0
  %v171 = vmul.f32 %v168, 0.032258064
  %v172 = vrsqrt.pop %v171
  %v173 = vmul.f32 %v171, %v172
  %vm174 = vcmp.eq.f32.partialorder %v171, inf
  %v175 = vsel %vm174, %v171, %v173
  %vm176 = vcmp.eq.f32.partialorder %v171, 0.0
  %v177 = vand.u32 %v171, 2147483648
  %v178 = vsel %vm176, %v177, %v175
  %v179 = vadd.f32 %v178, 1e-05
  %v180 = vrcp.pop %v179
  %v181 = vmul.f32 %v99, 0.1
  %v182 = vmul.f32 %v181, %v180
  %v183 = vsub.f32 1.0, %v182
  %v184 = vmul.f32 %v99, %v183
  %v185 = vmul.f32 %v184, %v180
  %186 = vst [vmem:[%s2] sm:$0xff] %v185
  // Predicated region
  $region10: #{layer_norm_impl.1} parent=0 // pred_check
    _
  $region11: #{layer_norm_impl.1} parent=0 // pred_check_branch
    %188 = sbr.rel (0) target = $region13
  $region12: #{layer_norm_impl.1} parent=0 // pred_region
    _
  $region13: #{layer_norm_impl.1} parent=0 // pred_fallthru
    _
  // Predicated region
  $region14: #{layer_norm_impl.1} parent=0 // pred_check
    _
  $region15: #{layer_norm_impl.1} parent=0 // pred_check_branch
    %190 = sbr.rel (0) target = $region17
  $region16: #{layer_norm_impl.1} parent=0 // pred_region
    _
  $region17: #{layer_norm_impl.1} parent=0 // pred_fallthru
    _

</llo_original>
